<compile_context>
chip_gen: v7x
topology: tpu7x:2x2x1
jax: 0.10.0
libtpu: 0.0.40
codegen_flags: <defaults>
</compile_context>

<pallas_src>
import functools

import jax
import jax.numpy as jnp
from jax.experimental import pallas as pl
from jax.experimental.pallas import tpu as pltpu

_LANE = 128
_SUB = 8


def _msle_kernel(p_ref, a_ref, o_ref, *, block_rows, blocks_per_core, valid_rows):
    c = pl.program_id(0)   # core-split ("parallel") axis
    j = pl.program_id(1)   # reduction ("arbitrary") axis

    @pl.when(j == 0)
    def _():
        o_ref[...] = jnp.zeros_like(o_ref)

    p = p_ref[...].astype(jnp.float32)
    a = a_ref[...].astype(jnp.float32)
    d = jnp.log1p(p) - jnp.log1p(a)
    sq = d * d

    # Mask rows outside the real array: covers both the ragged edge of the last
    # block and fully-out-of-range blocks whose index_map was clamped.
    blk = c * blocks_per_core + j
    row = jax.lax.broadcasted_iota(jnp.int32, (block_rows, _LANE), 0) + blk * block_rows
    sq = jnp.where(row < valid_rows, sq, 0.0)

    # Fold the (block_rows, 128) tile into one vreg-shaped (8, 128) partial sum
    # (pure VPU vreg adds; the only cross-lane reduction happens in the wrapper
    # on a tiny (ncores*8, 128) slab).
    partial = jnp.sum(sq.reshape(block_rows // _SUB, _SUB, _LANE), axis=0)
    o_ref[...] += partial


def msle_loss(pred, actual, *, max_block_rows=1024):
    assert pred.shape == actual.shape
    n = 1
    for s in pred.shape:
        n *= s

    # Lane-dense layout: flatten to (M, 128) with M a multiple of 8.
    # Reshape is a free bitcast when n % 1024 == 0 (no HBM copy). Only pad
    # (with zeros, which contribute exactly 0 to the loss) in the rare ragged
    # case.
    tile = _SUB * _LANE
    pad = (-n) % tile
    p = pred.reshape(-1)
    a = actual.reshape(-1)
    if pad:
        # TODO(synk): avoid this copy too by masking on the flat element index.
        p = jnp.pad(p, (0, pad))
        a = jnp.pad(a, (0, pad))

    m = (n + pad) // _LANE                      # rows; multiple of 8
    p2 = p.reshape(m, _LANE)
    a2 = a.reshape(m, _LANE)

    br = min(max_block_rows, m)                 # block rows (multiple of 8)
    blocks_total = pl.cdiv(m, br)
    ncores = 2 if blocks_total >= 2 else 1      # v7x: split across both TCs
    bpc = pl.cdiv(blocks_total, ncores)         # blocks per core

    def in_map(c, j):
        # Clamp so the DMA never targets a block past the array; those blocks
        # are fully masked to zero inside the kernel.
        return (jnp.minimum(c * bpc + j, blocks_total - 1), 0)

    kernel = functools.partial(
        _msle_kernel, block_rows=br, blocks_per_core=bpc, valid_rows=m)

    itemsize = jnp.dtype(p2.dtype).itemsize
    cost = pl.CostEstimate(
        flops=5 * n,
        transcendentals=2 * n,
        bytes_accessed=2 * m * _LANE * itemsize + ncores * _SUB * _LANE * 4,
    )

    out = pl.pallas_call(
        kernel,
        out_shape=jax.ShapeDtypeStruct((ncores * _SUB, _LANE), jnp.float32),
        grid_spec=pltpu.PrefetchScalarGridSpec(
            num_scalar_prefetch=0,
            grid=(ncores, bpc),
            in_specs=[
                pl.BlockSpec((br, _LANE), in_map),
                pl.BlockSpec((br, _LANE), in_map),
            ],
            out_specs=pl.BlockSpec((_SUB, _LANE), lambda c, j: (c, 0)),
        ),
        compiler_params=pltpu.CompilerParams(
            dimension_semantics=("parallel", "arbitrary"),
            vmem_limit_bytes=32 * 1024 * 1024,
        ),
        cost_estimate=cost,
    )(p2, a2)

    return jnp.sum(out) * (1.0 / float(n))


if __name__ == "__main__":
    key = jax.random.PRNGKey(0)
    k1, k2 = jax.random.split(key)
    # MSLE expects non-negative inputs; use uniform positives.
    shape = (2, 4, 16, 16)
    pred = jax.random.uniform(k1, shape, dtype=jnp.float32, minval=0.0, maxval=5.0)
    actual = jax.random.uniform(k2, shape, dtype=jnp.float32, minval=0.0, maxval=5.0)

    loss = msle_loss(pred, actual)
    jax.block_until_ready(loss)

    # Pure-JAX reference check.
    ref = jnp.mean((jnp.log(pred + 1.0) - jnp.log(actual + 1.0)) ** 2)
    assert jnp.allclose(loss, ref, rtol=1e-5, atol=1e-6), (loss, ref)

    print("KERNEL_OK")
</pallas_src>

<mosaic_0001>
module attributes {stable_mosaic.version = 11 : i64} {
  func.func @_msle_kernel(%arg0: i32, %arg1: i32, %arg2: memref<16x128xf32, #tpu.memory_space<vmem>>, %arg3: memref<16x128xf32, #tpu.memory_space<vmem>>, %arg4: memref<8x128xf32, #tpu.memory_space<vmem>>) attributes {dimension_semantics = [#tpu.dimension_semantics<parallel>, #tpu.dimension_semantics<arbitrary>], iteration_bounds = array<i64: 1, 1>, scalar_prefetch = 0 : i64, scratch_operands = 0 : i64, tpu.core_type = #tpu.core_type<tc>, window_params = [{transform_indices = @transform_0, window_bounds = array<i64: 16, 128>}, {transform_indices = @transform_1, window_bounds = array<i64: 16, 128>}, {transform_indices = @transform_2, window_bounds = array<i64: 8, 128>}]} {
    %c0_i32 = arith.constant 0 : i32
    %0 = arith.cmpi eq, %arg1, %c0_i32 : i32
    %1 = arith.extui %0 : i1 to i32
    %c0_i32_0 = arith.constant 0 : i32
    %2 = arith.cmpi ne, %1, %c0_i32_0 : i32
    scf.if %2 {
      %cst_10 = arith.constant 0.000000e+00 : f32
      %24 = vector.broadcast %cst_10 : f32 to vector<8x128xf32>
      %c0_11 = arith.constant 0 : index
      %c0_12 = arith.constant 0 : index
      %25 = vector.load %arg4[%c0_11, %c0_12] : memref<8x128xf32, #tpu.memory_space<vmem>>, vector<8x128xf32>
      tpu.vector_store %arg4[%c0_11, %c0_12], %24 {strides = array<i32>} : memref<8x128xf32, #tpu.memory_space<vmem>>, vector<8x128xf32>,
    } else {
    }
    %c0 = arith.constant 0 : index
    %c0_1 = arith.constant 0 : index
    %3 = vector.load %arg2[%c0, %c0_1] : memref<16x128xf32, #tpu.memory_space<vmem>>, vector<16x128xf32>
    %c0_2 = arith.constant 0 : index
    %c0_3 = arith.constant 0 : index
    %4 = vector.load %arg3[%c0_2, %c0_3] : memref<16x128xf32, #tpu.memory_space<vmem>>, vector<16x128xf32>
    %5 = math.log1p %3 : vector<16x128xf32>
    %6 = math.log1p %4 : vector<16x128xf32>
    %7 = arith.subf %5, %6 : vector<16x128xf32>
    %8 = arith.mulf %7, %7 : vector<16x128xf32>
    %c1_i32 = arith.constant 1 : i32
    %9 = arith.muli %arg0, %c1_i32 : i32
    %10 = arith.addi %9, %arg1 : i32
    %11 = tpu.iota {dimensions = array<i32: 0>} : vector<16x128xi32>
    %c16_i32 = arith.constant 16 : i32
    %12 = arith.muli %10, %c16_i32 : i32
    %13 = vector.broadcast %12 : i32 to vector<16x128xi32>
    %14 = arith.addi %11, %13 : vector<16x128xi32>
    %c16_i32_4 = arith.constant 16 : i32
    %15 = vector.broadcast %c16_i32_4 : i32 to vector<16x128xi32>
    %16 = arith.cmpi slt, %14, %15 : vector<16x128xi32>
    %cst = arith.constant 0.000000e+00 : f32
    %17 = vector.broadcast %cst : f32 to vector<16x128xf32>
    %18 = arith.select %16, %8, %17 : vector<16x128xi1>, vector<16x128xf32>
    %19 = vector.shape_cast %18 : vector<16x128xf32> to vector<2x8x128xf32>
    %cst_5 = arith.constant dense<0.000000e+00> : vector<8x128xf32>
    %20 = vector.multi_reduction <add>, %19, %cst_5 [0] : vector<2x8x128xf32> to vector<8x128xf32>
    %c0_6 = arith.constant 0 : index
    %c0_7 = arith.constant 0 : index
    %21 = vector.load %arg4[%c0_6, %c0_7] : memref<8x128xf32, #tpu.memory_space<vmem>>, vector<8x128xf32>
    %22 = arith.addf %21, %20 : vector<8x128xf32>
    %c0_8 = arith.constant 0 : index
    %c0_9 = arith.constant 0 : index
    %23 = vector.load %arg4[%c0_8, %c0_9] : memref<8x128xf32, #tpu.memory_space<vmem>>, vector<8x128xf32>
    tpu.vector_store %arg4[%c0_8, %c0_9], %22 {strides = array<i32>} : memref<8x128xf32, #tpu.memory_space<vmem>>, vector<8x128xf32>,
    return
  }
  func.func @transform_0(%arg0: i32, %arg1: i32) -> (i32, i32) {
    %c1_i32 = arith.constant 1 : i32
    %0 = arith.muli %arg0, %c1_i32 : i32
    %1 = arith.addi %0, %arg1 : i32
    %c0_i32 = arith.constant 0 : i32
    %2 = arith.minsi %1, %c0_i32 : i32
    %c0_i32_0 = arith.constant 0 : i32
    %c0_i32_1 = arith.constant 0 : i32
    return %2, %c0_i32_0 : i32, i32
  }
  func.func @transform_1(%arg0: i32, %arg1: i32) -> (i32, i32) {
    %c1_i32 = arith.constant 1 : i32
    %0 = arith.muli %arg0, %c1_i32 : i32
    %1 = arith.addi %0, %arg1 : i32
    %c0_i32 = arith.constant 0 : i32
    %2 = arith.minsi %1, %c0_i32 : i32
    %c0_i32_0 = arith.constant 0 : i32
    %c0_i32_1 = arith.constant 0 : i32
    return %2, %c0_i32_0 : i32, i32
  }
  func.func @transform_2(%arg0: i32, %arg1: i32) -> (i32, i32) {
    %c0_i32 = arith.constant 0 : i32
    %c0_i32_0 = arith.constant 0 : i32
    return %arg0, %c0_i32 : i32, i32
  }
}

</mosaic_0001>

<llo_original>
// kernel: tpu_custom_call.1
$region0: #{tpu_custom_call.1}
  #allocation0 [shape = 'u32[]', space=smem, size = 0x4, offset = 0x4, fixed_abs, tag = 'smem constant byte address 0x4 - core index']
  #allocation1 [shape = 'u32[144,128]{1,0:T(1,128)}', space=vmem, size = 0x12000, scoped, tag = 'internal scratch']
  %s0 = inlined_call_operand.hbm [shape: f32[16,128], index: 0, kind: input, shape index: {}]
  %s1 = inlined_call_operand.hbm [shape: f32[16,128], index: 1, kind: input, shape index: {}]
  %s2 = inlined_call_operand.hbm [shape: f32[8,128], index: 2, kind: output, shape index: {}]
  %s3 = sld [smem:[#allocation0]]
  $region30: #{tpu_custom_call.1} parent=0
    _
  %s5 = ssub.s32 1, %s3
  %s6 = scalar_select 0, %s5, %s3
  $region1: #{tpu_custom_call.1} parent=0
    #allocation2 [shape = 'u8[8192]{0}', space=vmem, size = 0x2000, scoped, tag = 'input window, operand 0, single buffered']
    #allocation3 [shape = 's32[1]{0}', space=sflag, size = 0x4, scoped, tag = 'scoped memory for tpu_custom_call.1']
    #allocation4 [shape = 's32[1]{0}', space=sflag, size = 0x4, scoped, tag = 'scoped memory for tpu_custom_call.1']
    #allocation5 [shape = 'u8[8192]{0}', space=vmem, size = 0x2000, scoped, tag = 'input window, operand 1, single buffered']
    #allocation6 [shape = 's32[1]{0}', space=sflag, size = 0x4, scoped, tag = 'scoped memory for tpu_custom_call.1']
    #allocation7 [shape = 'u8[4096]{0}', space=vmem, size = 0x1000, scoped, tag = 'output window, operand 0, single buffered']
    %7 = vsyncpa [#allocation3], 0
    %8 = vsyncpa [#allocation6], 0
    %9 = vsyncpa [#allocation4], 0
    // Predicated region
    $region2: #{tpu_custom_call.1} parent=1 // pred_check
      _
    $region3: #{tpu_custom_call.1} parent=1 // pred_check_branch
      %11 = sbr.rel (0) target = $region5
    $region4: #{tpu_custom_call.1} parent=1 // pred_region
      %s12 = sadd.s32 0, 0
      %p13 = scmp.lt.s32.totalorder %s12, 0
      %s14 = scalar_select %p13, %s12, 0
      %s15 = smul.u32 2, %s14
      %s17 = ssub.s32 256, 256
      %18 = vsyncadd [#allocation3], %s17
      %s19 = smul.addr %s15, 128
      %s20 = scalar_lea.hbm %s0, %s19
      %s21 = sshll.u32 [#allocation2], 4
      %s22 = int_to_ptr.vmem [resolvable:$true] %s21
      %27 = dma.hbm_to_vmem [thread:$0]  %s20, 256, %s22, [#allocation3], 128, 128, 8
    $region5: #{tpu_custom_call.1} parent=1 // pred_fallthru
      _
    // Predicated region
    $region6: #{tpu_custom_call.1} parent=1 // pred_check
      _
    $region7: #{tpu_custom_call.1} parent=1 // pred_check_branch
      %29 = sbr.rel (0) target = $region9
    $region8: #{tpu_custom_call.1} parent=1 // pred_region
      %s30 = sadd.s32 0, 0
      %p31 = scmp.lt.s32.totalorder %s30, 0
      %s32 = scalar_select %p31, %s30, 0
      %s33 = smul.u32 2, %s32
      %s35 = ssub.s32 256, 256
      %36 = vsyncadd [#allocation6], %s35
      %s37 = smul.addr %s33, 128
      %s38 = scalar_lea.hbm %s1, %s37
      %s39 = sshll.u32 [#allocation5], 4
      %s40 = int_to_ptr.vmem [resolvable:$true] %s39
      %45 = dma.hbm_to_vmem [thread:$0]  %s38, 256, %s40, [#allocation6], 128, 128, 8
    $region9: #{tpu_custom_call.1} parent=1 // pred_fallthru
      _
    // Predicated region
    $region10: #{tpu_custom_call.1} parent=1 // pred_check
      _
    $region11: #{tpu_custom_call.1} parent=1 // pred_check_branch
      %47 = sbr.rel (0) target = $region13
    $region12: #{tpu_custom_call.1} parent=1 // pred_region
      %48 = dma.done [#allocation3], 256
    $region13: #{tpu_custom_call.1} parent=1 // pred_fallthru
      _
    // Predicated region
    $region14: #{tpu_custom_call.1} parent=1 // pred_check
      _
    $region15: #{tpu_custom_call.1} parent=1 // pred_check_branch
      %50 = sbr.rel (0) target = $region17
    $region16: #{tpu_custom_call.1} parent=1 // pred_region
      %51 = dma.done [#allocation6], 256
    $region17: #{tpu_custom_call.1} parent=1 // pred_fallthru
      _
    %s52 = sadd.s32 0, 0
    %p53 = scmp.lt.s32.totalorder %s52, 0
    %s54 = scalar_select %p53, %s52, 0
    %s55 = smul.u32 2, %s54
    %s56 = sadd.s32 0, 0
    %p57 = scmp.lt.s32.totalorder %s56, 0
    %s58 = scalar_select %p57, %s56, 0
    %s59 = smul.u32 2, %s58
    %p60 = scmp.eq.s32.totalorder 0, 0
    // Predicated region
    $region18: #{tpu_custom_call.1} parent=1 // pred_check
      %p61 = pneg %p60
    $region19: #{tpu_custom_call.1} parent=1 // pred_check_branch
      %63 = sbr.rel (%p61) target = $region21
    $region20: #{tpu_custom_call.1} parent=1 // pred_region
      %64 = vst [vmem:[#allocation7] sm:$0xff] 0.0
    $region21: #{tpu_custom_call.1} parent=1 // pred_fallthru
      _
    %v65 = vld [vmem:[#allocation2] sm:$0xff]
    %v66 = vld [vmem:[#allocation2 + $0x8] sm:$0xff]
    %v67 = vld [vmem:[#allocation5] sm:$0xff]
    %v68 = vld [vmem:[#allocation5 + $0x8] sm:$0xff]
    %v69 = vadd.f32 %v65, 1.0
    %v70 = vlog2.pop %v69
    %v71 = vmul.f32 %v70, 0.6931472
    %v72 = vmul.f32 -0.5, %v65
    %v73 = vadd.f32 %v72, 1.0
    %v74 = vmul.f32 %v73, %v65
    %v75 = vand.u32 2147483647, %v65
    %vm76 = vcmp.lt.f32.partialorder %v75, 0.0004427343
    %v77 = vsel %vm76, %v74, %v71
    %v78 = vadd.f32 %v66, 1.0
    %v79 = vlog2.pop %v78
    %v80 = vmul.f32 %v79, 0.6931472
    %v81 = vmul.f32 -0.5, %v66
    %v82 = vadd.f32 %v81, 1.0
    %v83 = vmul.f32 %v82, %v66
    %v84 = vand.u32 2147483647, %v66
    %vm85 = vcmp.lt.f32.partialorder %v84, 0.0004427343
    %v86 = vsel %vm85, %v83, %v80
    %v87 = vadd.f32 %v67, 1.0
    %v88 = vlog2.pop %v87
    %v89 = vmul.f32 %v88, 0.6931472
    %v90 = vmul.f32 -0.5, %v67
    %v91 = vadd.f32 %v90, 1.0
    %v92 = vmul.f32 %v91, %v67
    %v93 = vand.u32 2147483647, %v67
    %vm94 = vcmp.lt.f32.partialorder %v93, 0.0004427343
    %v95 = vsel %vm94, %v92, %v89
    %v96 = vadd.f32 %v68, 1.0
    %v97 = vlog2.pop %v96
    %v98 = vmul.f32 %v97, 0.6931472
    %v99 = vmul.f32 -0.5, %v68
    %v100 = vadd.f32 %v99, 1.0
    %v101 = vmul.f32 %v100, %v68
    %v102 = vand.u32 2147483647, %v68
    %vm103 = vcmp.lt.f32.partialorder %v102, 0.0004427343
    %v104 = vsel %vm103, %v101, %v98
    %v105 = vsub.f32 %v77, %v95
    %v106 = vsub.f32 %v86, %v104
    %v107 = vmul.f32 %v105, %v105
    %v108 = vmul.f32 %v106, %v106
    %s109 = sadd.s32 0, 0
    %v110 = vlaneseq
    %v111 = vshrl.u32 %v110, 7
    %v112 = vadd.s32 %v111, 8
    %s113 = smul.u32 %s109, 16
    %v114 = vstv %s113
    %v115 = vadd.s32 %v111, %v114
    %v116 = vadd.s32 %v112, %v114
    %vm117 = vcmp.lt.s32.totalorder %v115, 16
    %vm118 = vcmp.lt.s32.totalorder %v116, 16
    %v119 = vsel %vm117, %v107, 0.0
    %v120 = vsel %vm118, %v108, 0.0
    %v121 = vadd.f32 %v119, %v120
    %v122 = vld [vmem:[#allocation7] sm:$0xff]
    %v123 = vadd.f32 %v122, %v121
    %124 = vst [vmem:[#allocation7] sm:$0xff] %v123
    // Predicated region
    $region22: #{tpu_custom_call.1} parent=1 // pred_check
      _
    $region23: #{tpu_custom_call.1} parent=1 // pred_check_branch
      %126 = sbr.rel (0) target = $region25
    $region24: #{tpu_custom_call.1} parent=1 // pred_region
      %s128 = ssub.s32 128, 128
      %129 = vsyncadd [#allocation4], %s128
      %s131 = sshll.u32 [#allocation7], 4
      %s132 = int_to_ptr.vmem [resolvable:$true] %s131
      %134 = dma.vmem_to_hbm [thread:$0]  %s132, 128, %s2, [#allocation4]
    $region25: #{tpu_custom_call.1} parent=1 // pred_fallthru
      _
    // Predicated region
    $region26: #{tpu_custom_call.1} parent=1 // pred_check
      _
    $region27: #{tpu_custom_call.1} parent=1 // pred_check_branch
      %136 = sbr.rel (0) target = $region29
    $region28: #{tpu_custom_call.1} parent=1 // pred_region
      %137 = dma.done [#allocation4], 128
    $region29: #{tpu_custom_call.1} parent=1 // pred_fallthru
      _
    %138 = vsyncpa [#allocation3], 1
    %139 = vsyncpa [#allocation6], 1
    %140 = vsyncpa [#allocation4], 1

</llo_original>
